<compile_context>
chip_gen: v5e
topology: v5e:2x2
jax: 0.10.0
libtpu: 0.0.40
codegen_flags: <defaults>
</compile_context>

<pallas_src>
import functools

import jax
import jax.numpy as jnp
from jax.experimental import pallas as pl
from jax.experimental.pallas import tpu as pltpu


_TARGET_BLOCK_BYTES = 1 << 20   # ~1 MiB of logits per grid step (~85% HBM roofline)
_MAX_TILE_N = 1024              # per-row (tile_n,1) temporaries cost tile_n*512 B each
_MAX_TILE_C = 2048              # lane-axis tile for vocab-scale class counts


def _round_up(x, m):
    return ((x + m - 1) // m) * m


def _sublane_align(itemsize):
    # min sublane tile: 8 for 32-bit, 16 for 16-bit, 32 for 8-bit dtypes
    return {4: 8, 2: 16, 1: 32}[itemsize]


def _auto_tiles(n, c, itemsize):
    sub = _sublane_align(itemsize)
    # Class (lane) tiling only for large, cleanly 128-divisible C; otherwise a
    # single full-C block (a partial C block would corrupt the row reductions).
    tile_c = c
    if c > _MAX_TILE_C and c % 128 == 0:
        for cand in (_MAX_TILE_C, 1024, 512, 256, 128):
            if c % cand == 0:
                tile_c = cand
                break
    # Batch (sublane) tiling: aim for ~_TARGET_BLOCK_BYTES of logits per step.
    tn = _TARGET_BLOCK_BYTES // max(tile_c * itemsize, 1)
    tn = max(sub, min(_MAX_TILE_N, (tn // sub) * sub))
    tn = min(tn, _round_up(n, sub))
    # Keep >= 2 batch tiles when N allows (v7x: shard "parallel" axis over 2 TCs).
    if tn >= n and n > sub:
        tn = _round_up(pl.cdiv(n, 2), sub)
    return tn, tile_c


def _vmem_limit_bytes(tile_n, tile_c, itemsize):
    blk_in = tile_n * tile_c * itemsize      # one logits block as DMA'd
    blk_f32 = tile_n * tile_c * 4            # one f32/i32 block temporary
    row_pad = tile_n * 128 * 4               # a (tile_n, 1) value, lane-padded
    budget = (2 * blk_in                     # double-buffered logits
              + 2 * row_pad                  # double-buffered targets
              + 4 * blk_f32                  # in-kernel block temporaries
              + 12 * row_pad                 # per-row temporaries + 3 scratch
              + (2 << 20))                   # slack
    return int(min(max(budget, 32 << 20), 56 << 20))  # stay under v7x 64 MiB


def _focal_loss_kernel(logits_ref, targets_ref, out_ref, m_sc, s_sc, t_sc, *,
                       alpha, gamma, n_total, tile_n, tile_c):
    i = pl.program_id(0)                 # batch-tile index ("parallel")
    j = pl.program_id(1)                 # class-tile index (reduction, innermost)
    nct = pl.num_programs(1)

    @pl.when(j == 0)
    def _():
        m_sc[...] = jnp.full_like(m_sc, -jnp.inf)   # running row max
        s_sc[...] = jnp.zeros_like(s_sc)            # running sum of exp(x - m)
        t_sc[...] = jnp.zeros_like(t_sc)            # accumulated target logit

    logits = logits_ref[...].astype(jnp.float32)    # (tile_n, tile_c), f32 math
    targets = targets_ref[...]                      # (tile_n, 1) int32
    tn, tc = logits.shape

    # target logit for rows whose class lives in this C tile (others add 0)
    local_tgt = targets - j * tile_c                # per-row subtract (cheap)
    class_ids = jax.lax.broadcasted_iota(jnp.int32, (tn, tc), 1)
    t_sc[...] += jnp.sum(jnp.where(class_ids == local_tgt, logits, 0.0),
                         axis=-1, keepdims=True)

    # online logsumexp update (numerically stable across C tiles)
    blk_max = jnp.max(logits, axis=-1, keepdims=True)
    m_new = jnp.maximum(m_sc[...], blk_max)
    s_sc[...] = (s_sc[...] * jnp.exp(m_sc[...] - m_new)
                 + jnp.sum(jnp.exp(logits - m_new), axis=-1, keepdims=True))
    m_sc[...] = m_new

    @pl.when(j == nct - 1)
    def _():
        m = m_sc[...]
        s = s_sc[...]
        tgt = t_sc[...]
        # cross entropy per row: logsumexp(x) - x[target]
        ce = jnp.log(s) + m - tgt
        # pt = softmax(x)[target]: reuse sum_exp instead of the exp(-ce) chain
        pt = jnp.exp(tgt - m) * pl.reciprocal(s, approx=False)
        q = jnp.maximum(1.0 - pt, 0.0)     # pt can round slightly above 1.0
        if float(gamma) == 2.0:
            mod = q * q                    # no pow: stays off the EUP
        elif float(gamma).is_integer():
            mod = q ** int(gamma)          # lax.integer_pow, VPU only
        else:
            mod = q ** gamma
        focal = alpha * mod * ce           # (tile_n, 1)

        # zero rows past the true N (partial last block holds garbage; where()
        # must run before the sum so stray NaN/inf rows are dropped)
        row_ids = jax.lax.broadcasted_iota(jnp.int32, focal.shape, 0) + i * tile_n
        focal = jnp.where(row_ids < n_total, focal, 0.0)

        # full unmasked 128-lane store; wrapper reads lane 0 of each tile
        out_ref[...] = jnp.full(out_ref.shape, jnp.sum(focal), dtype=jnp.float32)


def focal_loss(inputs, targets, alpha=1.0, gamma=2.0, reduction="mean",
               tile_n=None, tile_c=None):
    """inputs: (N, C) float logits (f32/bf16); targets: (N,) int class ids.

    Matches the PyTorch FocalLoss module with scalar alpha and
    reduction='mean' (default) or 'sum'.
    """
    if isinstance(alpha, (list, tuple)) or getattr(alpha, "ndim", 0) > 0:
        # TODO(synk): per-class alpha (list/ndarray) gather is not implemented.
        raise NotImplementedError("per-class alpha is not supported")
    if reduction not in ("mean", "sum"):
        # TODO(synk): reduction='none' needs a per-row (N,) output; not implemented.
        raise NotImplementedError("reduction must be 'mean' or 'sum'")

    n, c = inputs.shape
    itemsize = jnp.dtype(inputs.dtype).itemsize
    sub = _sublane_align(itemsize)

    auto_tn, auto_tc = _auto_tiles(n, c, itemsize)
    if tile_n is None:
        tile_n = auto_tn
    else:
        tile_n = min(_round_up(max(int(tile_n), 1), sub), _round_up(n, sub))
    tile_c = auto_tc if tile_c is None else int(tile_c)
    if c % tile_c != 0 or (tile_c != c and tile_c % 128 != 0):
        raise ValueError("tile_c must divide C and be a multiple of 128 (or == C)")

    num_n_tiles = pl.cdiv(n, tile_n)
    num_c_tiles = c // tile_c

    targets2d = targets.reshape(n, 1).astype(jnp.int32)
    # TODO(synk): targets travel as a 128-lane-padded (N,1) stream; a lane-dense
    # layout + in-kernel relayout would cut targets HBM traffic ~128x at small C.

    kernel = functools.partial(
        _focal_loss_kernel, alpha=float(alpha), gamma=float(gamma),
        n_total=n, tile_n=tile_n, tile_c=tile_c)

    cost = pl.CostEstimate(
        flops=6 * n * c,
        transcendentals=n * c + 4 * n,
        bytes_accessed=n * c * itemsize + n * 4 + num_n_tiles * 512)

    partials = pl.pallas_call(
        kernel,
        grid=(num_n_tiles, num_c_tiles),
        out_shape=jax.ShapeDtypeStruct((1, num_n_tiles * 128), jnp.float32),
        in_specs=[
            pl.BlockSpec((tile_n, tile_c), lambda i, j: (i, j)),
            pl.BlockSpec((tile_n, 1), lambda i, j: (i, 0)),
        ],
        out_specs=pl.BlockSpec((1, 128), lambda i, j: (0, i)),
        scratch_shapes=[pltpu.VMEM((tile_n, 1), jnp.float32)] * 3,
        compiler_params=pltpu.CompilerParams(
            dimension_semantics=("parallel", "arbitrary"),
            vmem_limit_bytes=_vmem_limit_bytes(tile_n, tile_c, itemsize)),
        cost_estimate=cost,
    )(inputs, targets2d)

    total = jnp.sum(partials.reshape(num_n_tiles, 128)[:, 0])
    return total / n if reduction == "mean" else total


def focal_loss_ref(inputs, targets, alpha=1.0, gamma=2.0, reduction="mean"):
    """Pure-JAX reference matching the PyTorch module (scalar alpha)."""
    logp = jax.nn.log_softmax(inputs.astype(jnp.float32), axis=-1)
    ce = -jnp.take_along_axis(logp, targets[:, None].astype(jnp.int32), axis=-1)[:, 0]
    pt = jnp.exp(-ce)
    fl = alpha * (1.0 - pt) ** gamma * ce
    return fl.mean() if reduction == "mean" else fl.sum()


if __name__ == "__main__":
    key = jax.random.PRNGKey(0)
    k1, k2 = jax.random.split(key)

    N, C = 20, 32
    logits = jax.random.normal(k1, (N, C), dtype=jnp.float32)
    targets = jax.random.randint(k2, (N,), 0, C, dtype=jnp.int32)

    # default path: auto tiles -> 2 batch tiles (partial last block), 1 C tile
    out = jax.block_until_ready(focal_loss(logits, targets))
    ref = focal_loss_ref(logits, targets)
    assert jnp.allclose(out, ref, rtol=1e-5, atol=1e-5), (out, ref)

    # odd integer gamma (clamped integer_pow path) + sum reduction
    out_g3 = jax.block_until_ready(
        focal_loss(logits, targets, gamma=3.0, reduction="sum"))
    ref_g3 = focal_loss_ref(logits, targets, gamma=3.0, reduction="sum")
    assert jnp.allclose(out_g3, ref_g3, rtol=1e-5, atol=1e-5), (out_g3, ref_g3)

    # multi-tile path: 3 batch tiles (partial last) x 2 C tiles (online logsumexp)
    C2 = 256
    logits2 = jax.random.normal(k1, (N, C2), dtype=jnp.float32)
    targets2 = jax.random.randint(k2, (N,), 0, C2, dtype=jnp.int32)
    out2 = jax.block_until_ready(focal_loss(logits2, targets2, tile_n=8, tile_c=128))
    ref2 = focal_loss_ref(logits2, targets2)
    assert jnp.allclose(out2, ref2, rtol=1e-5, atol=1e-5), (out2, ref2)

    # bf16 logits (tile_n rounded to 16; block stays bf16, f32 math in-kernel)
    logits3 = logits2.astype(jnp.bfloat16)
    out3 = jax.block_until_ready(focal_loss(logits3, targets2))
    ref3 = focal_loss_ref(logits3, targets2)
    assert jnp.allclose(out3, ref3, rtol=1e-5, atol=1e-5), (out3, ref3)

    print("KERNEL_OK")
</pallas_src>

<mosaic_0001>
module attributes {stable_mosaic.version = 11 : i64} {
  func.func @_focal_loss_kernel(%arg0: i32, %arg1: i32, %arg2: memref<16x32xf32, #tpu.memory_space<vmem>>, %arg3: memref<16x1xi32, #tpu.memory_space<vmem>>, %arg4: memref<1x128xf32, #tpu.memory_space<vmem>>, %arg5: memref<16x1xf32, #tpu.memory_space<vmem>>, %arg6: memref<16x1xf32, #tpu.memory_space<vmem>>, %arg7: memref<16x1xf32, #tpu.memory_space<vmem>>) attributes {dimension_semantics = [#tpu.dimension_semantics<parallel>, #tpu.dimension_semantics<arbitrary>], iteration_bounds = array<i64: 2, 1>, scalar_prefetch = 0 : i64, scratch_operands = 3 : i64, tpu.core_type = #tpu.core_type<tc>, window_params = [{transform_indices = @transform_0, window_bounds = array<i64: 16, 32>}, {transform_indices = @transform_1, window_bounds = array<i64: 16, 1>}, {transform_indices = @transform_2, window_bounds = array<i64: 1, 128>}]} {
    %c0_i32 = arith.constant 0 : i32
    %0 = arith.cmpi eq, %arg1, %c0_i32 : i32
    %1 = arith.extui %0 : i1 to i32
    %c0_i32_0 = arith.constant 0 : i32
    %2 = arith.cmpi ne, %1, %c0_i32_0 : i32
    scf.if %2 {
      %cst_23 = arith.constant 0xFF800000 : f32
      %38 = vector.broadcast %cst_23 : f32 to vector<16x1xf32>
      %c0_24 = arith.constant 0 : index
      %c0_25 = arith.constant 0 : index
      %39 = vector.load %arg5[%c0_24, %c0_25] : memref<16x1xf32, #tpu.memory_space<vmem>>, vector<16x1xf32>
      tpu.vector_store %arg5[%c0_24, %c0_25], %38 {strides = array<i32>} : memref<16x1xf32, #tpu.memory_space<vmem>>, vector<16x1xf32>,
      %cst_26 = arith.constant 0.000000e+00 : f32
      %40 = vector.broadcast %cst_26 : f32 to vector<16x1xf32>
      %c0_27 = arith.constant 0 : index
      %c0_28 = arith.constant 0 : index
      %41 = vector.load %arg6[%c0_27, %c0_28] : memref<16x1xf32, #tpu.memory_space<vmem>>, vector<16x1xf32>
      tpu.vector_store %arg6[%c0_27, %c0_28], %40 {strides = array<i32>} : memref<16x1xf32, #tpu.memory_space<vmem>>, vector<16x1xf32>,
      %cst_29 = arith.constant 0.000000e+00 : f32
      %42 = vector.broadcast %cst_29 : f32 to vector<16x1xf32>
      %c0_30 = arith.constant 0 : index
      %c0_31 = arith.constant 0 : index
      %43 = vector.load %arg7[%c0_30, %c0_31] : memref<16x1xf32, #tpu.memory_space<vmem>>, vector<16x1xf32>
      tpu.vector_store %arg7[%c0_30, %c0_31], %42 {strides = array<i32>} : memref<16x1xf32, #tpu.memory_space<vmem>>, vector<16x1xf32>,
    } else {
    }
    %c0 = arith.constant 0 : index
    %c0_1 = arith.constant 0 : index
    %3 = vector.load %arg2[%c0, %c0_1] : memref<16x32xf32, #tpu.memory_space<vmem>>, vector<16x32xf32>
    %c0_2 = arith.constant 0 : index
    %c0_3 = arith.constant 0 : index
    %4 = vector.load %arg3[%c0_2, %c0_3] : memref<16x1xi32, #tpu.memory_space<vmem>>, vector<16x1xi32>
    %c32_i32 = arith.constant 32 : i32
    %5 = arith.muli %arg1, %c32_i32 : i32
    %6 = vector.broadcast %5 : i32 to vector<16x1xi32>
    %7 = arith.subi %4, %6 : vector<16x1xi32>
    %8 = tpu.iota {dimensions = array<i32: 1>} : vector<16x32xi32>
    %c0_4 = arith.constant 0 : index
    %c0_5 = arith.constant 0 : index
    %9 = vector.load %arg7[%c0_4, %c0_5] : memref<16x1xf32, #tpu.memory_space<vmem>>, vector<16x1xf32>
    %10 = vector.broadcast %7 : vector<16x1xi32> to vector<16x32xi32>
    %11 = arith.cmpi eq, %8, %10 : vector<16x32xi32>
    %cst = arith.constant 0.000000e+00 : f32
    %12 = vector.broadcast %cst : f32 to vector<16x32xf32>
    %13 = arith.select %11, %3, %12 : vector<16x32xi1>, vector<16x32xf32>
    %cst_6 = arith.constant dense<0.000000e+00> : vector<16xf32>
    %14 = vector.multi_reduction <add>, %13, %cst_6 [1] : vector<16x32xf32> to vector<16xf32>
    %15 = vector.shape_cast %14 : vector<16xf32> to vector<16x1xf32>
    %16 = arith.addf %9, %15 : vector<16x1xf32>
    %c0_7 = arith.constant 0 : index
    %c0_8 = arith.constant 0 : index
    %17 = vector.load %arg7[%c0_7, %c0_8] : memref<16x1xf32, #tpu.memory_space<vmem>>, vector<16x1xf32>
    tpu.vector_store %arg7[%c0_7, %c0_8], %16 {strides = array<i32>} : memref<16x1xf32, #tpu.memory_space<vmem>>, vector<16x1xf32>,
    %cst_9 = arith.constant dense<0xFF800000> : vector<16xf32>
    %18 = vector.multi_reduction <maximumf>, %3, %cst_9 [1] : vector<16x32xf32> to vector<16xf32>
    %19 = vector.shape_cast %18 : vector<16xf32> to vector<16x1xf32>
    %c0_10 = arith.constant 0 : index
    %c0_11 = arith.constant 0 : index
    %20 = vector.load %arg5[%c0_10, %c0_11] : memref<16x1xf32, #tpu.memory_space<vmem>>, vector<16x1xf32>
    %21 = arith.maximumf %20, %19 : vector<16x1xf32>
    %c0_12 = arith.constant 0 : index
    %c0_13 = arith.constant 0 : index
    %22 = vector.load %arg6[%c0_12, %c0_13] : memref<16x1xf32, #tpu.memory_space<vmem>>, vector<16x1xf32>
    %c0_14 = arith.constant 0 : index
    %c0_15 = arith.constant 0 : index
    %23 = vector.load %arg5[%c0_14, %c0_15] : memref<16x1xf32, #tpu.memory_space<vmem>>, vector<16x1xf32>
    %24 = arith.subf %23, %21 : vector<16x1xf32>
    %25 = math.exp %24 : vector<16x1xf32>
    %26 = arith.mulf %22, %25 : vector<16x1xf32>
    %27 = vector.broadcast %21 : vector<16x1xf32> to vector<16x32xf32>
    %28 = arith.subf %3, %27 : vector<16x32xf32>
    %29 = math.exp %28 : vector<16x32xf32>
    %cst_16 = arith.constant dense<0.000000e+00> : vector<16xf32>
    %30 = vector.multi_reduction <add>, %29, %cst_16 [1] : vector<16x32xf32> to vector<16xf32>
    %31 = vector.shape_cast %30 : vector<16xf32> to vector<16x1xf32>
    %32 = arith.addf %26, %31 : vector<16x1xf32>
    %c0_17 = arith.constant 0 : index
    %c0_18 = arith.constant 0 : index
    %33 = vector.load %arg6[%c0_17, %c0_18] : memref<16x1xf32, #tpu.memory_space<vmem>>, vector<16x1xf32>
    tpu.vector_store %arg6[%c0_17, %c0_18], %32 {strides = array<i32>} : memref<16x1xf32, #tpu.memory_space<vmem>>, vector<16x1xf32>,
    %c0_19 = arith.constant 0 : index
    %c0_20 = arith.constant 0 : index
    %34 = vector.load %arg5[%c0_19, %c0_20] : memref<16x1xf32, #tpu.memory_space<vmem>>, vector<16x1xf32>
    tpu.vector_store %arg5[%c0_19, %c0_20], %21 {strides = array<i32>} : memref<16x1xf32, #tpu.memory_space<vmem>>, vector<16x1xf32>,
    %c0_i32_21 = arith.constant 0 : i32
    %35 = arith.cmpi eq, %arg1, %c0_i32_21 : i32
    %36 = arith.extui %35 : i1 to i32
    %c0_i32_22 = arith.constant 0 : i32
    %37 = arith.cmpi ne, %36, %c0_i32_22 : i32
    scf.if %37 {
      %c0_23 = arith.constant 0 : index
      %c0_24 = arith.constant 0 : index
      %38 = vector.load %arg5[%c0_23, %c0_24] : memref<16x1xf32, #tpu.memory_space<vmem>>, vector<16x1xf32>
      %c0_25 = arith.constant 0 : index
      %c0_26 = arith.constant 0 : index
      %39 = vector.load %arg6[%c0_25, %c0_26] : memref<16x1xf32, #tpu.memory_space<vmem>>, vector<16x1xf32>
      %c0_27 = arith.constant 0 : index
      %c0_28 = arith.constant 0 : index
      %40 = vector.load %arg7[%c0_27, %c0_28] : memref<16x1xf32, #tpu.memory_space<vmem>>, vector<16x1xf32>
      %41 = math.log %39 : vector<16x1xf32>
      %42 = arith.addf %41, %38 : vector<16x1xf32>
      %43 = arith.subf %42, %40 : vector<16x1xf32>
      %44 = arith.subf %40, %38 : vector<16x1xf32>
      %45 = math.exp %44 : vector<16x1xf32>
      %46 = tpu.reciprocal %39 : vector<16x1xf32> -> vector<16x1xf32>
      %47 = arith.mulf %45, %46 : vector<16x1xf32>
      %cst_29 = arith.constant 1.000000e+00 : f32
      %48 = vector.broadcast %cst_29 : f32 to vector<16x1xf32>
      %49 = arith.subf %48, %47 : vector<16x1xf32>
      %cst_30 = arith.constant 0.000000e+00 : f32
      %50 = vector.broadcast %cst_30 : f32 to vector<16x1xf32>
      %51 = arith.maximumf %49, %50 : vector<16x1xf32>
      %52 = arith.mulf %51, %51 : vector<16x1xf32>
      %cst_31 = arith.constant 1.000000e+00 : f32
      %53 = vector.broadcast %cst_31 : f32 to vector<16x1xf32>
      %54 = arith.mulf %53, %52 : vector<16x1xf32>
      %55 = arith.mulf %54, %43 : vector<16x1xf32>
      %56 = tpu.iota {dimensions = array<i32: 0>} : vector<16x1xi32>
      %c16_i32 = arith.constant 16 : i32
      %57 = arith.muli %arg0, %c16_i32 : i32
      %58 = vector.broadcast %57 : i32 to vector<16x1xi32>
      %59 = arith.addi %56, %58 : vector<16x1xi32>
      %c20_i32 = arith.constant 20 : i32
      %60 = vector.broadcast %c20_i32 : i32 to vector<16x1xi32>
      %61 = arith.cmpi slt, %59, %60 : vector<16x1xi32>
      %cst_32 = arith.constant 0.000000e+00 : f32
      %62 = vector.broadcast %cst_32 : f32 to vector<16x1xf32>
      %63 = arith.select %61, %55, %62 : vector<16x1xi1>, vector<16x1xf32>
      %64 = vector.shape_cast %63 : vector<16x1xf32> to vector<1x16x1xf32>
      %cst_33 = arith.constant dense<0.000000e+00> : vector<1xf32>
      %65 = vector.multi_reduction <add>, %64, %cst_33 [1, 2] : vector<1x16x1xf32> to vector<1xf32>
      %66 = vector.shape_cast %65 : vector<1xf32> to vector<1x1x1xf32>
      %67 = vector.extract %66[0, 0, 0] : f32 from vector<1x1x1xf32>
      %68 = vector.broadcast %67 : f32 to vector<1x128xf32>
      %c0_34 = arith.constant 0 : index
      %c0_35 = arith.constant 0 : index
      %69 = vector.load %arg4[%c0_34, %c0_35] : memref<1x128xf32, #tpu.memory_space<vmem>>, vector<1x128xf32>
      tpu.vector_store %arg4[%c0_34, %c0_35], %68 {strides = array<i32>} : memref<1x128xf32, #tpu.memory_space<vmem>>, vector<1x128xf32>,
    } else {
    }
    return
  }
  func.func @transform_0(%arg0: i32, %arg1: i32) -> (i32, i32) {
    %c0_i32 = arith.constant 0 : i32
    return %arg0, %arg1 : i32, i32
  }
  func.func @transform_1(%arg0: i32, %arg1: i32) -> (i32, i32) {
    %c0_i32 = arith.constant 0 : i32
    %c0_i32_0 = arith.constant 0 : i32
    return %arg0, %c0_i32 : i32, i32
  }
  func.func @transform_2(%arg0: i32, %arg1: i32) -> (i32, i32) {
    %c0_i32 = arith.constant 0 : i32
    %c0_i32_0 = arith.constant 0 : i32
    return %c0_i32, %arg0 : i32, i32
  }
}

</mosaic_0001>

<llo_original>
// kernel: tpu_custom_call.1
$region0: #{tpu_custom_call.1}
  #allocation0 [shape = 'u32[]', space=smem, size = 0x4, offset = 0x4, fixed_abs, tag = 'smem constant byte address 0x4 - core index']
  #allocation1 [shape = 'u32[72,128]{1,0:T(1,128)}', space=vmem, size = 0x9000, scoped, tag = 'internal scratch']
  #allocation2 [shape = 'f32[16,1]{1,0:T(8,128)}', space=vmem, size = 0x2000, scoped, tag = 'scratch operand']
  #allocation3 [shape = 'f32[16,1]{1,0:T(8,128)}', space=vmem, size = 0x2000, scoped, tag = 'scratch operand']
  #allocation4 [shape = 'f32[16,1]{1,0:T(8,128)}', space=vmem, size = 0x2000, scoped, tag = 'scratch operand']
  %s0 = inlined_call_operand.vmem [shape: f32[20,32], index: 0, kind: input, shape index: {}]
  %s1 = inlined_call_operand.vmem [shape: s32[20,1], index: 1, kind: input, shape index: {}]
  %s2 = inlined_call_operand.hbm [shape: f32[1,256], index: 2, kind: output, shape index: {}]
  %s3 = sld [smem:[#allocation0]]
  $region49: #{tpu_custom_call.1} parent=0
    _
  %s5 = ssub.s32 1, %s3
  %s6 = scalar_select 0, %s5, %s3
  $region1: #{tpu_custom_call.1} parent=0
    #allocation5 [shape = 'u8[1024]{0}', space=vmem, size = 0x400, scoped, tag = 'output window, operand 0']
    #allocation6 [shape = 's32[2]{0}', space=sflag, size = 0x8, scoped, tag = 'scoped memory for tpu_custom_call.1']
    %7 = vsyncpa [#allocation6], 0
    %s8 = scalar_lea.sflag [#allocation6], 1
    %9 = vsyncpa %s8, 0
    loop: start=0, step=1, limit=4
    $region2: #{tpu_custom_call.1} parent=1 // loop_pre_header
      _
    $region3: #{tpu_custom_call.1} parent=1 // loop_header
      %s11 = sphi 0, %s15
      %p12 = scmp.ge.s32.totalorder %s11, 4
      %s18 = sphi 0, %s30
      %s19 = sphi 0, %s26
      %s20 = sphi 0, %s18
      %s21 = sphi 0, %s19
      %s22 = sphi 0, %s20
      %s23 = sphi 0, %s21
      %s35 = sphi 0, %s37
      %s38 = sphi 0, %s35
      %s39 = sphi 0, %s38
      %s55 = sphi 0, %s39
      %s61 = sphi 0, %s63
      %s64 = sphi 0, %s61
      %s65 = sphi 0, %s64
      %s81 = sphi 0, %s65
      %s87 = sphi 0, %s89
      %s90 = sphi 0, %s87
      %s91 = sphi 0, %s90
      %s107 = sphi 0, %s91
    $region4: #{tpu_custom_call.1} parent=1 // loop_header_branch
      %14 = sbr.rel (%p12) target = $region8
    $region5: #{tpu_custom_call.1} parent=1 // loop_body
      %s16 = ssub.s32 %s11, 1
      %s17 = ssub.s32 %s11, 2
      %s24 = sadd.s32 1, %s19
      %p25 = scmp.ge.s32.totalorder %s24, 1
      %s26 = scalar_select %p25, 0, %s24
      %s27 = sadd.s32 1, %s18
      %s28 = scalar_select %p25, %s27, %s18
      %p29 = scmp.ge.s32.totalorder %s28, 2
      %s30 = scalar_select %p29, 0, %s28
      %s31 = ssub.s32 %s18, %s30
      %s32 = ssub.s32 %s19, %s26
      %s33 = sor.u32 %s31, %s32
      %p34 = scmp.eq.s32.totalorder %s33, 0
      %s36 = sadd.s32 %s35, 1
      %s37 = scalar_select %p34, %s35, %s36
      %p40 = pneg %p34
      %p41 = scmp.eq.s32.totalorder %s11, 1
      %p42 = por %p40, %p41
      %p43 = scmp.ne.s32.totalorder %s35, %s38
      %p44 = scmp.eq.s32.totalorder %s11, 0
      %p45 = por %p43, %p44
      %p46 = scmp.ne.s32.totalorder %s35, %s38
      %p47 = scmp.eq.s32.totalorder %s16, 1
      %p48 = por %p46, %p47
      %p49 = scmp.ne.s32.totalorder %s38, %s39
      %p50 = scmp.eq.s32.totalorder %s16, 0
      %p51 = por %p49, %p50
      %p52 = scmp.ne.s32.totalorder %s38, %s39
      %p53 = scmp.eq.s32.totalorder %s17, 1
      %p54 = por %p52, %p53
      %p56 = scmp.ne.s32.totalorder %s39, %s55
      %p57 = scmp.eq.s32.totalorder %s17, 0
      %p58 = por %p56, %p57
      %s59 = ssub.s32 %s18, %s30
      %p60 = scmp.eq.s32.totalorder %s59, 0
      %s62 = sadd.s32 %s61, 1
      %s63 = scalar_select %p60, %s61, %s62
      %p66 = pneg %p60
      %p67 = scmp.eq.s32.totalorder %s11, 1
      %p68 = por %p66, %p67
      %p69 = scmp.ne.s32.totalorder %s61, %s64
      %p70 = scmp.eq.s32.totalorder %s11, 0
      %p71 = por %p69, %p70
      %p72 = scmp.ne.s32.totalorder %s61, %s64
      %p73 = scmp.eq.s32.totalorder %s16, 1
      %p74 = por %p72, %p73
      %p75 = scmp.ne.s32.totalorder %s64, %s65
      %p76 = scmp.eq.s32.totalorder %s16, 0
      %p77 = por %p75, %p76
      %p78 = scmp.ne.s32.totalorder %s64, %s65
      %p79 = scmp.eq.s32.totalorder %s17, 1
      %p80 = por %p78, %p79
      %p82 = scmp.ne.s32.totalorder %s65, %s81
      %p83 = scmp.eq.s32.totalorder %s17, 0
      %p84 = por %p82, %p83
      %s85 = ssub.s32 %s18, %s30
      %p86 = scmp.eq.s32.totalorder %s85, 0
      %s88 = sadd.s32 %s87, 1
      %s89 = scalar_select %p86, %s87, %s88
      %p92 = pneg %p86
      %p93 = scmp.eq.s32.totalorder %s11, 1
      %p94 = por %p92, %p93
      %p95 = scmp.ne.s32.totalorder %s87, %s90
      %p96 = scmp.eq.s32.totalorder %s11, 0
      %p97 = por %p95, %p96
      %p98 = scmp.ne.s32.totalorder %s87, %s90
      %p99 = scmp.eq.s32.totalorder %s16, 1
      %p100 = por %p98, %p99
      %p101 = scmp.ne.s32.totalorder %s90, %s91
      %p102 = scmp.eq.s32.totalorder %s16, 0
      %p103 = por %p101, %p102
      %p104 = scmp.ne.s32.totalorder %s90, %s91
      %p105 = scmp.eq.s32.totalorder %s17, 1
      %p106 = por %p104, %p105
      %p108 = scmp.ne.s32.totalorder %s91, %s107
      %p109 = scmp.eq.s32.totalorder %s17, 0
      %p110 = por %p108, %p109
      %p111 = scmp.le.s32.totalorder 1, %s11
      %p112 = scmp.lt.s32.totalorder %s11, 3
      %p113 = pnand %p111, %p112
      %p114 = pneg %p113
      // Predicated region
      $region9: #{tpu_custom_call.1} parent=5 // pred_check
        _
      $region10: #{tpu_custom_call.1} parent=5 // pred_check_branch
        %116 = sbr.rel (%p113) target = $region12
      $region11: #{tpu_custom_call.1} parent=5 // pred_region
        %s117 = ssub.s32 %s11, 1
      $region12: #{tpu_custom_call.1} parent=5 // pred_fallthru
        _
      %p118 = scmp.lt.s32.totalorder %s11, 2
      // Predicated region
      $region13: #{tpu_custom_call.1} parent=5 // pred_check
        %p119 = pneg %p118
      $region14: #{tpu_custom_call.1} parent=5 // pred_check_branch
        %121 = sbr.rel (%p119) target = $region16
      $region15: #{tpu_custom_call.1} parent=5 // pred_region
        // Predicated region
        $region17: #{tpu_custom_call.1} parent=15 // pred_check
          %p122 = pneg %p45
        $region18: #{tpu_custom_call.1} parent=15 // pred_check_branch
          %124 = sbr.rel (%p122) target = $region20
        $region19: #{tpu_custom_call.1} parent=15 // pred_region
          %s125 = smul.u32 2, %s18
          %s126 = ssub.s32 3, %s125
          %p127 = scmp.lt.s32.totalorder %s126, 2
          %s128 = scalar_select %p127, %s126, 2
          %s129 = smul.u32 8, %s128
          %p130 = scmp.lt.s32.totalorder %s125, 2
          %s131 = scalar_select %p130, %s125, 2
          %p132 = scmp.lt.s32.totalorder %s19, 0
          %s133 = scalar_select %p132, %s19, 0
          %s134 = sadd.s32 %s133, %s131
          %s135 = smul.addr %s134, 8
          %s136 = scalar_lea.vmem %s0, %s135
          %s137 = smul.u32 2, %s18
          %s138 = ssub.s32 3, %s137
          %p139 = scmp.lt.s32.totalorder %s138, 2
          %s140 = scalar_select %p139, %s138, 2
          %s141 = smul.u32 8, %s140
        $region20: #{tpu_custom_call.1} parent=15 // pred_fallthru
          _
        // Predicated region
        $region21: #{tpu_custom_call.1} parent=15 // pred_check
          %p142 = pneg %p71
        $region22: #{tpu_custom_call.1} parent=15 // pred_check_branch
          %144 = sbr.rel (%p142) target = $region24
        $region23: #{tpu_custom_call.1} parent=15 // pred_region
          %s145 = smul.u32 2, %s18
          %s146 = ssub.s32 3, %s145
          %p147 = scmp.lt.s32.totalorder %s146, 2
          %s148 = scalar_select %p147, %s146, 2
          %s149 = smul.u32 8, %s148
          %p150 = scmp.lt.s32.totalorder %s145, 2
          %s151 = scalar_select %p150, %s145, 2
          %s152 = smul.addr %s151, 8
          %s153 = scalar_lea.vmem %s1, %s152
          %s154 = smul.u32 2, %s18
          %s155 = ssub.s32 3, %s154
          %p156 = scmp.lt.s32.totalorder %s155, 2
          %s157 = scalar_select %p156, %s155, 2
          %s158 = smul.u32 8, %s157
        $region24: #{tpu_custom_call.1} parent=15 // pred_fallthru
          _
      $region16: #{tpu_custom_call.1} parent=5 // pred_fallthru
        _
      %p159 = scmp.le.s32.totalorder 1, %s11
      %p160 = scmp.lt.s32.totalorder %s11, 3
      %p161 = pnand %p159, %p160
      %p162 = pneg %p161
      // Predicated region
      $region25: #{tpu_custom_call.1} parent=5 // pred_check
        _
      $region26: #{tpu_custom_call.1} parent=5 // pred_check_branch
        %164 = sbr.rel (%p161) target = $region28
      $region27: #{tpu_custom_call.1} parent=5 // pred_region
        %s165 = ssub.s32 %s11, 1
        %s166 = smul.u32 2, %s20
        %s167 = ssub.s32 3, %s166
        %p168 = scmp.lt.s32.totalorder %s167, 2
        %s169 = scalar_select %p168, %s167, 2
        %s170 = smul.u32 8, %s169
        %p171 = scmp.lt.s32.totalorder %s166, 2
        %s172 = scalar_select %p171, %s166, 2
        %p173 = scmp.lt.s32.totalorder %s21, 0
        %s174 = scalar_select %p173, %s21, 0
        %s175 = sadd.s32 %s174, %s172
        %s176 = smul.addr %s175, 8
        %s177 = scalar_lea.vmem %s0, %s176
        %p178 = pneg %p51
        %p179 = pneg %p48
        %s180 = smul.u32 2, %s20
        %s181 = ssub.s32 3, %s180
        %p182 = scmp.lt.s32.totalorder %s181, 2
        %s183 = scalar_select %p182, %s181, 2
        %s184 = smul.u32 8, %s183
        %p185 = scmp.lt.s32.totalorder %s180, 2
        %s186 = scalar_select %p185, %s180, 2
        %s187 = smul.addr %s186, 8
        %s188 = scalar_lea.vmem %s1, %s187
        %p189 = pneg %p77
        %p190 = pneg %p74
        %p191 = pneg %p103
        %p192 = pneg %p100
        %s193 = sand.u32 %s90, 1
        %s194 = scalar_lea.sflag [#allocation6], %s193
        %s195 = sand.u32 %s90, 1
        %s196 = scalar_lea.vmem [#allocation5], %s195
        %s197 = smul.u32 2, %s20
        %s198 = ssub.s32 3, %s197
        %p199 = scmp.lt.s32.totalorder %s198, 2
        %s200 = scalar_select %p199, %s198, 2
        %s201 = smul.u32 8, %s200
        %p202 = scmp.lt.s32.totalorder %s197, 2
        %s203 = scalar_select %p202, %s197, 2
        %p204 = scmp.lt.s32.totalorder %s21, 0
        %s205 = scalar_select %p204, %s21, 0
        %s206 = sadd.s32 %s205, %s203
        %s207 = smul.addr %s206, 8
        %s208 = scalar_lea.vmem %s0, %s207
        %s209 = smul.u32 2, %s20
        %s210 = ssub.s32 3, %s209
        %p211 = scmp.lt.s32.totalorder %s210, 2
        %s212 = scalar_select %p211, %s210, 2
        %s213 = smul.u32 8, %s212
        %s214 = smul.u32 2, %s20
        %s215 = ssub.s32 3, %s214
        %p216 = scmp.lt.s32.totalorder %s215, 2
        %s217 = scalar_select %p216, %s215, 2
        %s218 = smul.u32 8, %s217
        %p219 = scmp.lt.s32.totalorder %s214, 2
        %s220 = scalar_select %p219, %s214, 2
        %s221 = smul.addr %s220, 8
        %s222 = scalar_lea.vmem %s1, %s221
        %s223 = smul.u32 2, %s20
        %s224 = ssub.s32 3, %s223
        %p225 = scmp.lt.s32.totalorder %s224, 2
        %s226 = scalar_select %p225, %s224, 2
        %s227 = smul.u32 8, %s226
        %p228 = scmp.eq.s32.totalorder %s21, 0
        // Predicated region
        $region29: #{tpu_custom_call.1} parent=27 // pred_check
          %p229 = pneg %p228
        $region30: #{tpu_custom_call.1} parent=27 // pred_check_branch
          %231 = sbr.rel (%p229) target = $region32
        $region31: #{tpu_custom_call.1} parent=27 // pred_region
          %vm232 = vcmask 7168
          %233 = vst.msk [vmem:[#allocation2] sm:$0xff] %vm232, -inf
          %234 = vst.msk [vmem:[#allocation2 + $0x8] sm:$0xff] %vm232, -inf
          %235 = vst.msk [vmem:[#allocation3] sm:$0xff] %vm232, 0.0
          %236 = vst.msk [vmem:[#allocation3 + $0x8] sm:$0xff] %vm232, 0.0
          %237 = vst.msk [vmem:[#allocation4] sm:$0xff] %vm232, 0.0
          %238 = vst.msk [vmem:[#allocation4 + $0x8] sm:$0xff] %vm232, 0.0
        $region32: #{tpu_custom_call.1} parent=27 // pred_fallthru
          _
        %v239 = vld [vmem:[%s208] sm:$0xff]
        %v240 = vld [vmem:[%s208 + $0x8] sm:$0xff]
        %v241 = vld [vmem:[%s222] sm:$0xff]
        %v242 = vld [vmem:[%s222 + $0x8] sm:$0xff]
        %s243 = smul.u32 %s21, 32
        %v244 = vstv %s243
        %v245 = vsub.s32 %v241, %v244
        %v246 = vsub.s32 %v242, %v244
        %v247 = vlaneseq
        %v248 = vand.u32 %v247, 127
        %v249 = vld [vmem:[#allocation4] sm:$0xff]
        %v250 = vld [vmem:[#allocation4 + $0x8] sm:$0xff]
        %251 = vset.pattern.permute.xlu0 0
        %252 = vperm.xlu0 %251, %v245
        %v253 = vpop.permute.xlu0 %252
        %254 = vset.pattern.permute.xlu0 0
        %255 = vperm.xlu0 %254, %v246
        %v256 = vpop.permute.xlu0 %255
        %vm257 = vcmp.eq.s32.totalorder %v248, %v253
        %vm258 = vcmp.eq.s32.totalorder %v248, %v256
        %v259 = vsel %vm257, %v239, 0.0
        %v260 = vsel %vm258, %v240, 0.0
        %vm261 = vcmask 261120
        %v262 = vsel %vm261, %v259, 0.0
        %263 = vadd.xlane.f32.xlu0 %v262
        %v264 = vpop.xlane.xlu0 %263
        %v265 = vsel %vm261, %v260, 0.0
        %266 = vadd.xlane.f32.xlu0 %v265
        %v267 = vpop.xlane.xlu0 %266
        %v268 = vadd.f32 %v249, %v264
        %v269 = vadd.f32 %v250, %v267
        %vm270 = vcmask 7168
        %271 = vst.msk [vmem:[#allocation4] sm:$0xff] %vm270, %v268
        %272 = vst.msk [vmem:[#allocation4 + $0x8] sm:$0xff] %vm270, %v269
        %v273 = vsel %vm261, %v239, -inf
        %274 = vmax.xlane.f32.xlu0 %v273
        %v275 = vpop.xlane.xlu0 %274
        %v276 = vsel %vm261, %v240, -inf
        %277 = vmax.xlane.f32.xlu0 %v276
        %v278 = vpop.xlane.xlu0 %277
        %v279 = vld [vmem:[#allocation2] sm:$0xff]
        %v280 = vld [vmem:[#allocation2 + $0x8] sm:$0xff]
        %v281 = vmax.f32 %v279, %v275
        %v282 = vmax.f32 %v280, %v278
        %v283 = vld [vmem:[#allocation3] sm:$0xff]
        %v284 = vld [vmem:[#allocation3 + $0x8] sm:$0xff]
        %v285 = vsub.f32 %v279, %v281
        %v286 = vsub.f32 %v280, %v282
        %v287 = vmul.f32 %v285, 1.442695
        %v288 = vpow.pop %v287
        %v289 = vmul.f32 %v286, 1.442695
        %v290 = vpow.pop %v289
        %v291 = vmul.f32 %v283, %v288
        %v292 = vmul.f32 %v284, %v290
        %294 = vset.pattern.permute.xlu0 0
        %295 = vperm.xlu0 %294, %v281
        %v296 = vpop.permute.xlu0 %295
        %299 = vset.pattern.permute.xlu0 0
        %300 = vperm.xlu0 %299, %v282
        %v301 = vpop.permute.xlu0 %300
        %v303 = vsub.f32 %v239, %v296
        %v304 = vsub.f32 %v240, %v301
        %v305 = vmul.f32 %v303, 1.442695
        %v306 = vpow.pop %v305
        %v307 = vmul.f32 %v304, 1.442695
        %v308 = vpow.pop %v307
        %v309 = vsel %vm261, %v306, 0.0
        %310 = vadd.xlane.f32.xlu0 %v309
        %v311 = vpop.xlane.xlu0 %310
        %v312 = vsel %vm261, %v308, 0.0
        %313 = vadd.xlane.f32.xlu0 %v312
        %v314 = vpop.xlane.xlu0 %313
        %v315 = vadd.f32 %v291, %v311
        %v316 = vadd.f32 %v292, %v314
        %317 = vst.msk [vmem:[#allocation3] sm:$0xff] %vm270, %v315
        %318 = vst.msk [vmem:[#allocation3 + $0x8] sm:$0xff] %vm270, %v316
        %319 = vst.msk [vmem:[#allocation2] sm:$0xff] %vm270, %v281
        %320 = vst.msk [vmem:[#allocation2 + $0x8] sm:$0xff] %vm270, %v282
        // Predicated region
        $region33: #{tpu_custom_call.1} parent=27 // pred_check
          %p321 = pneg %p228
        $region34: #{tpu_custom_call.1} parent=27 // pred_check_branch
          %323 = sbr.rel (%p321) target = $region36
        $region35: #{tpu_custom_call.1} parent=27 // pred_region
          %v324 = vld [vmem:[#allocation2] sm:$0xff]
          %v325 = vld [vmem:[#allocation2 + $0x8] sm:$0xff]
          %v326 = vld [vmem:[#allocation3] sm:$0xff]
          %v327 = vld [vmem:[#allocation3 + $0x8] sm:$0xff]
          %v328 = vld [vmem:[#allocation4] sm:$0xff]
          %v329 = vld [vmem:[#allocation4 + $0x8] sm:$0xff]
          %v330 = vlog2.pop %v326
          %v331 = vmul.f32 %v330, 0.6931472
          %v332 = vlog2.pop %v327
          %v333 = vmul.f32 %v332, 0.6931472
          %v334 = vadd.f32 %v331, %v324
          %v335 = vadd.f32 %v333, %v325
          %v336 = vsub.f32 %v334, %v328
          %v337 = vsub.f32 %v335, %v329
          %v338 = vsub.f32 %v328, %v324
          %v339 = vsub.f32 %v329, %v325
          %v340 = vmul.f32 %v338, 1.442695
          %v341 = vpow.pop %v340
          %v342 = vmul.f32 %v339, 1.442695
          %v343 = vpow.pop %v342
          %v344 = vrcp.pop %v326
          %v345 = vmul.f32 %v326, %v344
          %v346 = vsub.f32 1.0, %v345
          %v347 = vmul.f32 %v344, %v346
          %v348 = vadd.f32 %v344, %v347
          %vm349 = vweird.f32 %v326
          %vm350 = vweird.f32 %v344
          %vm351 = vmor %vm349, %vm350
          %v352 = vsel %vm351, %v344, %v348
          %v353 = vand.u32 2147483647, %v326
          %vm354 = vcmp.eq.f32.partialorder %v353, 8.507059e+37
          %v355 = vand.u32 %v326, 2147483648
          %v356 = vor.u32 1.1754944e-38, %v355
          %v357 = vsel %vm354, %v356, %v352
          %v358 = vrcp.pop %v327
          %v359 = vmul.f32 %v327, %v358
          %v360 = vsub.f32 1.0, %v359
          %v361 = vmul.f32 %v358, %v360
          %v362 = vadd.f32 %v358, %v361
          %vm363 = vweird.f32 %v327
          %vm364 = vweird.f32 %v358
          %vm365 = vmor %vm363, %vm364
          %v366 = vsel %vm365, %v358, %v362
          %v367 = vand.u32 2147483647, %v327
          %vm368 = vcmp.eq.f32.partialorder %v367, 8.507059e+37
          %v369 = vand.u32 %v327, 2147483648
          %v370 = vor.u32 1.1754944e-38, %v369
          %v371 = vsel %vm368, %v370, %v366
          %v372 = vmul.f32 %v341, %v357
          %v373 = vmul.f32 %v343, %v371
          %v374 = vsub.f32 1.0, %v372
          %v375 = vsub.f32 1.0, %v373
          %v376 = vmax.f32 %v374, 0.0
          %v377 = vmax.f32 %v375, 0.0
          %v378 = vmul.f32 %v376, %v376
          %v379 = vmul.f32 %v377, %v377
          %v380 = vmul.f32 %v378, %v336
          %v381 = vmul.f32 %v379, %v337
          %v382 = vlaneseq
          %v383 = vshrl.u32 %v382, 7
          %v384 = vadd.s32 %v383, 8
          %s385 = smul.u32 %s20, 16
          %v386 = vstv %s385
          %v387 = vadd.s32 %v383, %v386
          %v388 = vadd.s32 %v384, %v386
          %vm389 = vcmp.lt.s32.totalorder %v387, 20
          %vm390 = vcmp.lt.s32.totalorder %v388, 20
          %v391 = vsel %vm389, %v380, 0.0
          %v392 = vsel %vm390, %v381, 0.0
          %v393 = vsel %vm270, %v391, 0.0
          %v394 = vsel %vm270, %v392, 0.0
          %v395 = vadd.f32 %v393, %v394
          %396 = vadd.xlane.f32.xlu0 %v395
          %v397 = vpop.xlane.xlu0 %396
          %v398 = vrot.slane %v397, 4
          %v399 = vadd.f32 %v397, %v398
          %v400 = vrot.slane %v399, 2
          %v401 = vadd.f32 %v399, %v400
          %v402 = vrot.slane %v401, 1
          %v403 = vadd.f32 %v401, %v402
          %s404 = vtos %v403
          %v405 = vstv %s404
          %406 = vst [vmem:[%s196] sm:$0x1] %v405
        $region36: #{tpu_custom_call.1} parent=27 // pred_fallthru
          _
        %s407 = sand.u32 %s90, 1
        %s408 = scalar_lea.sflag [#allocation6], %s407
        %s409 = sand.u32 %s90, 1
        %s410 = scalar_lea.vmem [#allocation5], %s409
        // Predicated region
        $region37: #{tpu_custom_call.1} parent=27 // pred_check
          %p411 = pneg %p100
        $region38: #{tpu_custom_call.1} parent=27 // pred_check_branch
          %413 = sbr.rel (%p411) target = $region40
        $region39: #{tpu_custom_call.1} parent=27 // pred_region
          %415 = vsyncadd %s408, 0
          %s416 = scalar_lea.hbm %s2, %s20
          %s418 = sshll.u32 %s410, 4
          %s419 = int_to_ptr.vmem [resolvable:$true] %s418
          %s420 = sshll.u32 %s416, 4
          %s421 = int_to_ptr.hbm [resolvable:$true] %s420
          %423 = dma.vmem_to_hbm [thread:$0]  %s419, 16, %s421, %s408
        $region40: #{tpu_custom_call.1} parent=27 // pred_fallthru
          _
      $region28: #{tpu_custom_call.1} parent=5 // pred_fallthru
        _
      %p424 = scmp.le.s32.totalorder 2, %s11
      // Predicated region
      $region41: #{tpu_custom_call.1} parent=5 // pred_check
        %p425 = pneg %p424
      $region42: #{tpu_custom_call.1} parent=5 // pred_check_branch
        %427 = sbr.rel (%p425) target = $region44
      $region43: #{tpu_custom_call.1} parent=5 // pred_region
        %s428 = ssub.s32 %s11, 2
        // Predicated region
        $region45: #{tpu_custom_call.1} parent=43 // pred_check
          %p429 = pneg %p106
        $region46: #{tpu_custom_call.1} parent=43 // pred_check_branch
          %431 = sbr.rel (%p429) target = $region48
        $region47: #{tpu_custom_call.1} parent=43 // pred_region
          %s432 = sand.u32 %s91, 1
          %s433 = scalar_lea.sflag [#allocation6], %s432
          %s434 = sand.u32 %s91, 1
          %s435 = scalar_lea.vmem [#allocation5], %s434
          %437 = dma.done %s433, 16
        $region48: #{tpu_custom_call.1} parent=43 // pred_fallthru
          _
      $region44: #{tpu_custom_call.1} parent=5 // pred_fallthru
        _
    $region6: #{tpu_custom_call.1} parent=1 // loop_footer
      %s15 = sadd.s32 1, %s11
    $region7: #{tpu_custom_call.1} parent=1 // loop_footer_branch
      %10 = sbr.rel target = $region3
    $region8: #{tpu_custom_call.1} parent=1 // loop_exit
      _
    %438 = vsyncpa [#allocation6], 1
    %s439 = scalar_lea.sflag [#allocation6], 1
    %440 = vsyncpa %s439, 1

</llo_original>
